<compile_context>
chip_gen: v6e
topology: v6e:2x2x1
jax: 0.10.0
libtpu: 0.0.40
codegen_flags: <defaults>
</compile_context>

<pallas_src>
import functools

import jax
import jax.numpy as jnp
from jax import lax
from jax.experimental import pallas as pl
from jax.experimental.pallas import tpu as pltpu


def _conv_gru_kernel(mix_ref, wbig_ref, whh_ref, b_ref, mask_ref, out_ref,
                     rh_pad_ref, *, H, W, Cl):
    # mix_ref  : (1, Cp, L_in) zero-padded cat([h, x]) flattened row-major over
    #            the padded (H+2, W+2) grid (plus 2 trailing zeros).
    # wbig_ref : (3*Cl, 9*Cp)  fused [z | r | h_x] weights (transposed im2col).
    # whh_ref  : (Cl, 9*Cl)    hidden-channel part of the h conv.
    # b_ref    : (3*Cl, 1)     fused [bz | br | bh].
    # mask_ref : (1, Lq)       1.0 on real output columns, 0.0 on row-wrap cols.
    # out_ref  : (1, Cl, Lq)   new hidden state on the flat output grid.
    # rh_pad_ref: (Cl, L_in)   VMEM scratch for the zero-padded r*h slab.
    Wp = W + 2
    Lq = H * Wp
    center = Wp + 1                       # offset of output pixel (0,0)'s center
    shifts = [dy * Wp + dx for dy in range(3) for dx in range(3)]

    base = mix_ref[0]                                          # (Cp, L_in)

    # im2col (transposed): rows = (tap, channel), cols = flat output grid.
    patches = jnp.concatenate([base[:, s:s + Lq] for s in shifts], axis=0)

    # One fused matmul -> [z_pre | r_pre | conv(x, Wh_x)+bh], shape (3*Cl, Lq).
    pre = jnp.dot(wbig_ref[...], patches,
                  preferred_element_type=jnp.float32) + b_ref[...]

    z = jax.nn.sigmoid(pre[:Cl])
    r = jax.nn.sigmoid(pre[Cl:2 * Cl])
    hx = pre[2 * Cl:]                                          # x-part of h_hat

    h_c = base[:Cl, center:center + Lq]                        # h aligned to out

    # r*h with the row-wrap columns zeroed (they coincide with the spatial
    # pad columns of the padded grid, which must stay zero for the next conv).
    rh = r * h_c * mask_ref[...]

    # Zero-padded r*h slab, then its im2col and the second matmul.
    rh_pad_ref[...] = jnp.zeros(rh_pad_ref.shape, rh_pad_ref.dtype)
    rh_pad_ref[:, center:center + Lq] = rh
    rhp = rh_pad_ref[...]
    rh_patches = jnp.concatenate([rhp[:, s:s + Lq] for s in shifts], axis=0)

    hh = jnp.dot(whh_ref[...], rh_patches, preferred_element_type=jnp.float32)
    h_hat = jnp.tanh(hx + hh)

    # h_t = (1 - z) * h + z * h_hat
    out_ref[0] = ((1.0 - z) * h_c + z * h_hat).astype(out_ref.dtype)


def conv_gru_cell_pallas(x_nchw, h_nchw, params):
    """ConvGRUCell.forward(input, state) -> new hidden state. NCHW in / NCHW out."""
    wz, wr, wh, bz, br, bh = params     # wz/wr/wh: (3,3,Cl+Cin,Cl) HWIO; b*: (Cl,)
    x = x_nchw.astype(jnp.float32)
    h = h_nchw.astype(jnp.float32)
    N, Cin, H, W = x.shape
    Cl = h.shape[1]
    Ct = Cl + Cin
    Cp = -(-Ct // 8) * 8                 # channel count rounded to sublane multiple
    Wp = W + 2
    Lq = H * Wp                          # flat output-grid length
    L_in = (H + 2) * Wp + 2              # flat padded-input length (max tap fits)

    # ---- activations: cat([h, x]) (torch cat order), pad, flatten ----
    mix = jnp.concatenate([h, x], axis=1)                        # (N, Ct, H, W)
    mix = jnp.pad(mix, ((0, 0), (0, Cp - Ct), (1, 1), (1, 1)))   # (N, Cp, H+2, W+2)
    mix = mix.reshape(N, Cp, (H + 2) * Wp)
    mix = jnp.pad(mix, ((0, 0), (0, 0), (0, L_in - (H + 2) * Wp)))

    # ---- fused weights, reshaped for the transposed im2col matmuls ----
    def pad_cin(w):
        return jnp.pad(w, ((0, 0), (0, 0), (0, Cp - Ct), (0, 0)))

    wh_x = wh.at[:, :, :Cl, :].set(0.0)          # keep only the input-channel part
    w_big = jnp.concatenate([pad_cin(wz), pad_cin(wr), pad_cin(wh_x)], axis=-1)
    w_big_t = w_big.reshape(9 * Cp, 3 * Cl).T            # (3*Cl, 9*Cp)
    w_hh_t = wh[:, :, :Cl, :].reshape(9 * Cl, Cl).T      # (Cl, 9*Cl)
    b_cat = jnp.concatenate([bz, br, bh]).reshape(3 * Cl, 1)

    # Columns of the flat output grid that are real pixels (not row wrap-around).
    valid = (jnp.arange(Lq, dtype=jnp.int32) % Wp < W)
    valid = valid.astype(jnp.float32).reshape(1, Lq)

    kernel = functools.partial(_conv_gru_kernel, H=H, W=W, Cl=Cl)

    out = pl.pallas_call(
        kernel,
        out_shape=jax.ShapeDtypeStruct((N, Cl, Lq), jnp.float32),
        grid_spec=pltpu.PrefetchScalarGridSpec(
            num_scalar_prefetch=0,
            grid=(N,),
            in_specs=[
                pl.BlockSpec((1, Cp, L_in), lambda n: (n, 0, 0)),   # mix slab
                pl.BlockSpec((3 * Cl, 9 * Cp), lambda n: (0, 0)),   # fused z/r/hx W
                pl.BlockSpec((Cl, 9 * Cl), lambda n: (0, 0)),       # hh W
                pl.BlockSpec((3 * Cl, 1), lambda n: (0, 0)),        # fused bias
                pl.BlockSpec((1, Lq), lambda n: (0, 0)),            # valid-col mask
            ],
            out_specs=pl.BlockSpec((1, Cl, Lq), lambda n: (n, 0, 0)),
            scratch_shapes=[pltpu.VMEM((Cl, L_in), jnp.float32)],
        ),
        compiler_params=pltpu.CompilerParams(
            dimension_semantics=("parallel",)),
    )(mix, w_big_t, w_hh_t, b_cat, valid)

    # (N, Cl, H*(W+2)) -> (N, Cl, H, W): drop the two wrap columns per row.
    return out.reshape(N, Cl, H, Wp)[:, :, :, :W]


def conv_gru_cell_ref(x_nchw, h_nchw, params):
    """Pure-JAX reference mirroring the PyTorch forward (for verification)."""
    wz, wr, wh, bz, br, bh = params
    x = x_nchw.astype(jnp.float32)
    h = h_nchw.astype(jnp.float32)

    def conv(inp, w, b):
        return lax.conv_general_dilated(
            inp, w, window_strides=(1, 1), padding="SAME",
            dimension_numbers=("NCHW", "HWIO", "NCHW")) + b.reshape(1, -1, 1, 1)

    mix = jnp.concatenate([h, x], axis=1)
    z = jax.nn.sigmoid(conv(mix, wz, bz))
    r = jax.nn.sigmoid(conv(mix, wr, br))
    mix2 = jnp.concatenate([r * h, x], axis=1)
    h_hat = jnp.tanh(conv(mix2, wh, bh))
    return (1.0 - z) * h + z * h_hat


def init_params(key, in_channels, lstm_channels):
    """Deterministic init matching nn.Conv2d defaults: U(-1/sqrt(fan_in), +1/sqrt(fan_in))."""
    c_total = in_channels + lstm_channels
    bound = 1.0 / float(jnp.sqrt(jnp.float32(c_total * 9)))
    ks = jax.random.split(key, 6)
    shape_w = (3, 3, c_total, lstm_channels)  # HWIO, cin order = [hidden, input]
    wz = jax.random.uniform(ks[0], shape_w, jnp.float32, -bound, bound)
    wr = jax.random.uniform(ks[1], shape_w, jnp.float32, -bound, bound)
    wh = jax.random.uniform(ks[2], shape_w, jnp.float32, -bound, bound)
    bz = jax.random.uniform(ks[3], (lstm_channels,), jnp.float32, -bound, bound)
    br = jax.random.uniform(ks[4], (lstm_channels,), jnp.float32, -bound, bound)
    bh = jax.random.uniform(ks[5], (lstm_channels,), jnp.float32, -bound, bound)
    return (wz, wr, wh, bz, br, bh)


if __name__ == "__main__":
    batch, in_channels, height, width = 2, 4, 16, 16
    lstm_channels = 16

    key = jax.random.PRNGKey(0)
    kx, kh, kp = jax.random.split(key, 3)
    x = jax.random.normal(kx, (batch, in_channels, height, width), jnp.float32)
    state = jax.random.normal(kh, (batch, lstm_channels, height, width), jnp.float32)
    params = init_params(kp, in_channels, lstm_channels)

    h_new = jax.block_until_ready(conv_gru_cell_pallas(x, state, params))
    h_ref = jax.block_until_ready(conv_gru_cell_ref(x, state, params))

    assert h_new.shape == (batch, lstm_channels, height, width)
    max_err = float(jnp.max(jnp.abs(h_new - h_ref)))
    assert max_err < 1e-4, f"max abs error {max_err}"

    print("KERNEL_OK")
</pallas_src>

<mosaic_0001>
module attributes {stable_mosaic.version = 11 : i64} {
  func.func @_conv_gru_kernel(%arg0: i32, %arg1: memref<1x24x326xf32, #tpu.memory_space<vmem>>, %arg2: memref<48x216xf32, #tpu.memory_space<vmem>>, %arg3: memref<16x144xf32, #tpu.memory_space<vmem>>, %arg4: memref<48x1xf32, #tpu.memory_space<vmem>>, %arg5: memref<1x288xf32, #tpu.memory_space<vmem>>, %arg6: memref<1x16x288xf32, #tpu.memory_space<vmem>>, %arg7: memref<16x326xf32, #tpu.memory_space<vmem>>) attributes {dimension_semantics = [#tpu.dimension_semantics<parallel>], iteration_bounds = array<i64: 2>, scalar_prefetch = 0 : i64, scratch_operands = 1 : i64, tpu.core_type = #tpu.core_type<tc>, window_params = [{transform_indices = @transform_0, window_bounds = array<i64: 1, 24, 326>}, {pipeline_mode = #tpu.pipeline_mode<synchronous>, transform_indices = @transform_1, window_bounds = array<i64: 48, 216>}, {pipeline_mode = #tpu.pipeline_mode<synchronous>, transform_indices = @transform_2, window_bounds = array<i64: 16, 144>}, {pipeline_mode = #tpu.pipeline_mode<synchronous>, transform_indices = @transform_3, window_bounds = array<i64: 48, 1>}, {pipeline_mode = #tpu.pipeline_mode<synchronous>, transform_indices = @transform_4, window_bounds = array<i64: 1, 288>}, {transform_indices = @transform_5, window_bounds = array<i64: 1, 16, 288>}]} {
    %c0 = arith.constant 0 : index
    %c0_0 = arith.constant 0 : index
    %c0_1 = arith.constant 0 : index
    %0 = vector.load %arg1[%c0, %c0_0, %c0_1] : memref<1x24x326xf32, #tpu.memory_space<vmem>>, vector<1x24x326xf32>
    %1 = vector.shape_cast %0 : vector<1x24x326xf32> to vector<24x326xf32>
    %2 = vector.extract_strided_slice %1 {offsets = [0, 0], sizes = [24, 288], strides = [1, 1]} : vector<24x326xf32> to vector<24x288xf32>
    %3 = vector.extract_strided_slice %1 {offsets = [0, 1], sizes = [24, 288], strides = [1, 1]} : vector<24x326xf32> to vector<24x288xf32>
    %4 = vector.extract_strided_slice %1 {offsets = [0, 2], sizes = [24, 288], strides = [1, 1]} : vector<24x326xf32> to vector<24x288xf32>
    %5 = vector.extract_strided_slice %1 {offsets = [0, 18], sizes = [24, 288], strides = [1, 1]} : vector<24x326xf32> to vector<24x288xf32>
    %6 = vector.extract_strided_slice %1 {offsets = [0, 19], sizes = [24, 288], strides = [1, 1]} : vector<24x326xf32> to vector<24x288xf32>
    %7 = vector.extract_strided_slice %1 {offsets = [0, 20], sizes = [24, 288], strides = [1, 1]} : vector<24x326xf32> to vector<24x288xf32>
    %8 = vector.extract_strided_slice %1 {offsets = [0, 36], sizes = [24, 288], strides = [1, 1]} : vector<24x326xf32> to vector<24x288xf32>
    %9 = vector.extract_strided_slice %1 {offsets = [0, 37], sizes = [24, 288], strides = [1, 1]} : vector<24x326xf32> to vector<24x288xf32>
    %10 = vector.extract_strided_slice %1 {offsets = [0, 38], sizes = [24, 288], strides = [1, 1]} : vector<24x326xf32> to vector<24x288xf32>
    %11 = tpu.concatenate %2, %3, %4, %5, %6, %7, %8, %9, %10 in 0 : vector<24x288xf32>, vector<24x288xf32>, vector<24x288xf32>, vector<24x288xf32>, vector<24x288xf32>, vector<24x288xf32>, vector<24x288xf32>, vector<24x288xf32>, vector<24x288xf32> -> vector<216x288xf32>
    %c0_2 = arith.constant 0 : index
    %c0_3 = arith.constant 0 : index
    %12 = vector.load %arg2[%c0_2, %c0_3] : memref<48x216xf32, #tpu.memory_space<vmem>>, vector<48x216xf32>
    %cst = arith.constant dense<0.000000e+00> : vector<48x288xf32>
    %13 = tpu.matmul %12, %11, %cst {dimension_numbers = #tpu.dot_dimension_numbers<[1], [0], [0], [1], [0, 0, 1, 1], [], []>} : vector<48x216xf32>, vector<216x288xf32>, vector<48x288xf32> -> vector<48x288xf32>
    %c0_4 = arith.constant 0 : index
    %c0_5 = arith.constant 0 : index
    %14 = vector.load %arg4[%c0_4, %c0_5] : memref<48x1xf32, #tpu.memory_space<vmem>>, vector<48x1xf32>
    %15 = vector.broadcast %14 : vector<48x1xf32> to vector<48x288xf32>
    %16 = arith.addf %13, %15 : vector<48x288xf32>
    %17 = vector.extract_strided_slice %16 {offsets = [0, 0], sizes = [16, 288], strides = [1, 1]} : vector<48x288xf32> to vector<16x288xf32>
    %18 = arith.negf %17 : vector<16x288xf32>
    %19 = math.exp %18 : vector<16x288xf32>
    %cst_6 = arith.constant 1.000000e+00 : f32
    %20 = vector.broadcast %cst_6 : f32 to vector<16x288xf32>
    %21 = arith.addf %20, %19 : vector<16x288xf32>
    %22 = arith.divf %20, %21 : vector<16x288xf32>
    %23 = vector.extract_strided_slice %16 {offsets = [16, 0], sizes = [16, 288], strides = [1, 1]} : vector<48x288xf32> to vector<16x288xf32>
    %24 = arith.negf %23 : vector<16x288xf32>
    %25 = math.exp %24 : vector<16x288xf32>
    %cst_7 = arith.constant 1.000000e+00 : f32
    %26 = vector.broadcast %cst_7 : f32 to vector<16x288xf32>
    %27 = arith.addf %26, %25 : vector<16x288xf32>
    %28 = arith.divf %26, %27 : vector<16x288xf32>
    %29 = vector.extract_strided_slice %16 {offsets = [32, 0], sizes = [16, 288], strides = [1, 1]} : vector<48x288xf32> to vector<16x288xf32>
    %30 = vector.extract_strided_slice %1 {offsets = [0, 19], sizes = [16, 288], strides = [1, 1]} : vector<24x326xf32> to vector<16x288xf32>
    %31 = arith.mulf %28, %30 : vector<16x288xf32>
    %c0_8 = arith.constant 0 : index
    %c0_9 = arith.constant 0 : index
    %32 = vector.load %arg5[%c0_8, %c0_9] : memref<1x288xf32, #tpu.memory_space<vmem>>, vector<1x288xf32>
    %33 = vector.broadcast %32 : vector<1x288xf32> to vector<16x288xf32>
    %34 = arith.mulf %31, %33 : vector<16x288xf32>
    %cst_10 = arith.constant 0.000000e+00 : f32
    %35 = vector.broadcast %cst_10 : f32 to vector<16x326xf32>
    %c0_11 = arith.constant 0 : index
    %c0_12 = arith.constant 0 : index
    %36 = vector.load %arg7[%c0_11, %c0_12] : memref<16x326xf32, #tpu.memory_space<vmem>>, vector<16x326xf32>
    tpu.vector_store %arg7[%c0_11, %c0_12], %35 {strides = array<i32>} : memref<16x326xf32, #tpu.memory_space<vmem>>, vector<16x326xf32>,
    %c0_13 = arith.constant 0 : index
    %c19 = arith.constant 19 : index
    %37 = vector.load %arg7[%c0_13, %c19] : memref<16x326xf32, #tpu.memory_space<vmem>>, vector<16x288xf32>
    tpu.vector_store %arg7[%c0_13, %c19], %34 {strides = array<i32>} : memref<16x326xf32, #tpu.memory_space<vmem>>, vector<16x288xf32>,
    %c0_14 = arith.constant 0 : index
    %c0_15 = arith.constant 0 : index
    %38 = vector.load %arg7[%c0_14, %c0_15] : memref<16x326xf32, #tpu.memory_space<vmem>>, vector<16x326xf32>
    %39 = vector.extract_strided_slice %38 {offsets = [0, 0], sizes = [16, 288], strides = [1, 1]} : vector<16x326xf32> to vector<16x288xf32>
    %40 = vector.extract_strided_slice %38 {offsets = [0, 1], sizes = [16, 288], strides = [1, 1]} : vector<16x326xf32> to vector<16x288xf32>
    %41 = vector.extract_strided_slice %38 {offsets = [0, 2], sizes = [16, 288], strides = [1, 1]} : vector<16x326xf32> to vector<16x288xf32>
    %42 = vector.extract_strided_slice %38 {offsets = [0, 18], sizes = [16, 288], strides = [1, 1]} : vector<16x326xf32> to vector<16x288xf32>
    %43 = vector.extract_strided_slice %38 {offsets = [0, 19], sizes = [16, 288], strides = [1, 1]} : vector<16x326xf32> to vector<16x288xf32>
    %44 = vector.extract_strided_slice %38 {offsets = [0, 20], sizes = [16, 288], strides = [1, 1]} : vector<16x326xf32> to vector<16x288xf32>
    %45 = vector.extract_strided_slice %38 {offsets = [0, 36], sizes = [16, 288], strides = [1, 1]} : vector<16x326xf32> to vector<16x288xf32>
    %46 = vector.extract_strided_slice %38 {offsets = [0, 37], sizes = [16, 288], strides = [1, 1]} : vector<16x326xf32> to vector<16x288xf32>
    %47 = vector.extract_strided_slice %38 {offsets = [0, 38], sizes = [16, 288], strides = [1, 1]} : vector<16x326xf32> to vector<16x288xf32>
    %48 = tpu.concatenate %39, %40, %41, %42, %43, %44, %45, %46, %47 in 0 : vector<16x288xf32>, vector<16x288xf32>, vector<16x288xf32>, vector<16x288xf32>, vector<16x288xf32>, vector<16x288xf32>, vector<16x288xf32>, vector<16x288xf32>, vector<16x288xf32> -> vector<144x288xf32>
    %c0_16 = arith.constant 0 : index
    %c0_17 = arith.constant 0 : index
    %49 = vector.load %arg3[%c0_16, %c0_17] : memref<16x144xf32, #tpu.memory_space<vmem>>, vector<16x144xf32>
    %cst_18 = arith.constant dense<0.000000e+00> : vector<16x288xf32>
    %50 = tpu.matmul %49, %48, %cst_18 {dimension_numbers = #tpu.dot_dimension_numbers<[1], [0], [0], [1], [0, 0, 1, 1], [], []>} : vector<16x144xf32>, vector<144x288xf32>, vector<16x288xf32> -> vector<16x288xf32>
    %51 = arith.addf %29, %50 : vector<16x288xf32>
    %52 = math.tanh %51 : vector<16x288xf32>
    %cst_19 = arith.constant 1.000000e+00 : f32
    %53 = vector.broadcast %cst_19 : f32 to vector<16x288xf32>
    %54 = arith.subf %53, %22 : vector<16x288xf32>
    %55 = arith.mulf %54, %30 : vector<16x288xf32>
    %56 = arith.mulf %22, %52 : vector<16x288xf32>
    %57 = arith.addf %55, %56 : vector<16x288xf32>
    %c0_20 = arith.constant 0 : index
    %c0_21 = arith.constant 0 : index
    %c0_22 = arith.constant 0 : index
    %58 = vector.load %arg6[%c0_20, %c0_21, %c0_22] : memref<1x16x288xf32, #tpu.memory_space<vmem>>, vector<1x16x288xf32>
    %59 = vector.shape_cast %58 : vector<1x16x288xf32> to vector<16x288xf32>
    %60 = vector.shape_cast %57 : vector<16x288xf32> to vector<1x16x288xf32>
    tpu.vector_store %arg6[%c0_20, %c0_21, %c0_22], %60 {strides = array<i32>} : memref<1x16x288xf32, #tpu.memory_space<vmem>>, vector<1x16x288xf32>,
    return
  }
  func.func @transform_0(%arg0: i32) -> (i32, i32, i32) {
    %c0_i32 = arith.constant 0 : i32
    %c0_i32_0 = arith.constant 0 : i32
    %c0_i32_1 = arith.constant 0 : i32
    return %arg0, %c0_i32, %c0_i32_0 : i32, i32, i32
  }
  func.func @transform_1(%arg0: i32) -> (i32, i32) {
    %c0_i32 = arith.constant 0 : i32
    %c0_i32_0 = arith.constant 0 : i32
    %c0_i32_1 = arith.constant 0 : i32
    return %c0_i32, %c0_i32_0 : i32, i32
  }
  func.func @transform_2(%arg0: i32) -> (i32, i32) {
    %c0_i32 = arith.constant 0 : i32
    %c0_i32_0 = arith.constant 0 : i32
    %c0_i32_1 = arith.constant 0 : i32
    return %c0_i32, %c0_i32_0 : i32, i32
  }
  func.func @transform_3(%arg0: i32) -> (i32, i32) {
    %c0_i32 = arith.constant 0 : i32
    %c0_i32_0 = arith.constant 0 : i32
    %c0_i32_1 = arith.constant 0 : i32
    return %c0_i32, %c0_i32_0 : i32, i32
  }
  func.func @transform_4(%arg0: i32) -> (i32, i32) {
    %c0_i32 = arith.constant 0 : i32
    %c0_i32_0 = arith.constant 0 : i32
    %c0_i32_1 = arith.constant 0 : i32
    return %c0_i32, %c0_i32_0 : i32, i32
  }
  func.func @transform_5(%arg0: i32) -> (i32, i32, i32) {
    %c0_i32 = arith.constant 0 : i32
    %c0_i32_0 = arith.constant 0 : i32
    %c0_i32_1 = arith.constant 0 : i32
    return %arg0, %c0_i32, %c0_i32_0 : i32, i32, i32
  }
}

</mosaic_0001>

<llo_original>
// kernel: tpu_custom_call.1
$region0: #{tpu_custom_call.1}
  #allocation0 [shape = 'u32[]', space=smem, size = 0x4, offset = 0x4, fixed_abs, tag = 'smem constant byte address 0x4 - core index']
  #allocation1 [shape = 'u32[144,128]{1,0:T(1,128)}', space=vmem, size = 0x12000, scoped, tag = 'internal scratch']
  #allocation2 [shape = 'f32[16,326]{1,0:T(8,128)}', space=vmem, size = 0x6000, scoped, tag = 'scratch operand']
  %s0 = inlined_call_operand.hbm [shape: f32[2,24,326], index: 0, kind: input, shape index: {}]
  %s1 = inlined_call_operand.hbm [shape: f32[48,216], index: 1, kind: input, shape index: {}]
  %s2 = inlined_call_operand.vmem [shape: f32[16,144], index: 2, kind: input, shape index: {}]
  %s3 = inlined_call_operand.vmem [shape: f32[48,1], index: 3, kind: input, shape index: {}]
  %s4 = inlined_call_operand.vmem [shape: f32[1,288], index: 4, kind: input, shape index: {}]
  %s5 = inlined_call_operand.hbm [shape: f32[2,16,288], index: 5, kind: output, shape index: {}]
  %s6 = sld [smem:[#allocation0]]
  $region61: #{tpu_custom_call.1} parent=0
    _
  %s8 = ssub.s32 1, %s6
  %s9 = scalar_select 0, %s8, %s6
  $region1: #{tpu_custom_call.1} parent=0
    #allocation3 [shape = 'u8[73728]{0}', space=vmem, size = 0x12000, scoped, tag = 'input window, operand 0']
    #allocation4 [shape = 's32[2]{0}', space=sflag, size = 0x8, scoped, tag = 'scoped memory for tpu_custom_call.1']
    #allocation5 [shape = 's32[2]{0}', space=sflag, size = 0x8, scoped, tag = 'scoped memory for tpu_custom_call.1']
    #allocation6 [shape = 'u8[49152]{0}', space=vmem, size = 0xc000, scoped, tag = 'input window, operand 1, single buffered']
    #allocation7 [shape = 's32[1]{0}', space=sflag, size = 0x4, scoped, tag = 'scoped memory for tpu_custom_call.1']
    #allocation8 [shape = 'u8[49152]{0}', space=vmem, size = 0xc000, scoped, tag = 'output window, operand 0']
    %10 = vsyncpa [#allocation4], 0
    %s11 = scalar_lea.sflag [#allocation4], 1
    %12 = vsyncpa %s11, 0
    %13 = vsyncpa [#allocation7], 0
    %14 = vsyncpa [#allocation5], 0
    %s15 = scalar_lea.sflag [#allocation5], 1
    %16 = vsyncpa %s15, 0
    loop: start=0, step=1, limit=4
    $region2: #{tpu_custom_call.1} parent=1 // loop_pre_header
      _
    $region3: #{tpu_custom_call.1} parent=1 // loop_header
      %s18 = sphi 0, %s22
      %p19 = scmp.ge.s32.totalorder %s18, 4
      %s28 = sphi 0, %s30
      %s31 = sphi 0, %s28
      %s32 = sphi 0, %s31
      %s48 = sphi 0, %s32
      %s52 = sphi 0, %s52
      %s54 = sphi 0, %s52
      %s55 = sphi 0, %s54
      %s69 = sphi 0, %s55
      %s73 = sphi 0, %s73
      %s75 = sphi 0, %s73
      %s76 = sphi 0, %s75
      %s90 = sphi 0, %s76
      %s94 = sphi 0, %s94
      %s96 = sphi 0, %s94
      %s97 = sphi 0, %s96
      %s111 = sphi 0, %s97
      %s115 = sphi 0, %s115
      %s117 = sphi 0, %s115
      %s118 = sphi 0, %s117
      %s132 = sphi 0, %s118
      %s138 = sphi 0, %s140
      %s141 = sphi 0, %s138
      %s142 = sphi 0, %s141
      %s158 = sphi 0, %s142
    $region4: #{tpu_custom_call.1} parent=1 // loop_header_branch
      %21 = sbr.rel (%p19) target = $region8
    $region5: #{tpu_custom_call.1} parent=1 // loop_body
      %s23 = ssub.s32 %s18, 1
      %s24 = ssub.s32 %s18, 2
      %s25 = sadd.s32 %s18, 1
      %s26 = ssub.s32 %s18, %s25
      %p27 = scmp.eq.s32.totalorder %s26, 0
      %s29 = sadd.s32 %s28, 1
      %s30 = scalar_select %p27, %s28, %s29
      %p33 = pneg %p27
      %p34 = scmp.eq.s32.totalorder %s18, 1
      %p35 = por %p33, %p34
      %p36 = scmp.ne.s32.totalorder %s28, %s31
      %p37 = scmp.eq.s32.totalorder %s18, 0
      %p38 = por %p36, %p37
      %p39 = scmp.ne.s32.totalorder %s28, %s31
      %p40 = scmp.eq.s32.totalorder %s23, 1
      %p41 = por %p39, %p40
      %p42 = scmp.ne.s32.totalorder %s31, %s32
      %p43 = scmp.eq.s32.totalorder %s23, 0
      %p44 = por %p42, %p43
      %p45 = scmp.ne.s32.totalorder %s31, %s32
      %p46 = scmp.eq.s32.totalorder %s24, 1
      %p47 = por %p45, %p46
      %p49 = scmp.ne.s32.totalorder %s32, %s48
      %p50 = scmp.eq.s32.totalorder %s24, 0
      %p51 = por %p49, %p50
      %s53 = sadd.s32 %s52, 1
      %p56 = scmp.eq.s32.totalorder %s18, 1
      %p57 = scmp.ne.s32.totalorder %s52, %s54
      %p58 = scmp.eq.s32.totalorder %s18, 0
      %p59 = por %p57, %p58
      %p60 = scmp.ne.s32.totalorder %s52, %s54
      %p61 = scmp.eq.s32.totalorder %s23, 1
      %p62 = por %p60, %p61
      %p63 = scmp.ne.s32.totalorder %s54, %s55
      %p64 = scmp.eq.s32.totalorder %s23, 0
      %p65 = por %p63, %p64
      %p66 = scmp.ne.s32.totalorder %s54, %s55
      %p67 = scmp.eq.s32.totalorder %s24, 1
      %p68 = por %p66, %p67
      %p70 = scmp.ne.s32.totalorder %s55, %s69
      %p71 = scmp.eq.s32.totalorder %s24, 0
      %p72 = por %p70, %p71
      %s74 = sadd.s32 %s73, 1
      %p77 = scmp.eq.s32.totalorder %s18, 1
      %p78 = scmp.ne.s32.totalorder %s73, %s75
      %p79 = scmp.eq.s32.totalorder %s18, 0
      %p80 = por %p78, %p79
      %p81 = scmp.ne.s32.totalorder %s73, %s75
      %p82 = scmp.eq.s32.totalorder %s23, 1
      %p83 = por %p81, %p82
      %p84 = scmp.ne.s32.totalorder %s75, %s76
      %p85 = scmp.eq.s32.totalorder %s23, 0
      %p86 = por %p84, %p85
      %p87 = scmp.ne.s32.totalorder %s75, %s76
      %p88 = scmp.eq.s32.totalorder %s24, 1
      %p89 = por %p87, %p88
      %p91 = scmp.ne.s32.totalorder %s76, %s90
      %p92 = scmp.eq.s32.totalorder %s24, 0
      %p93 = por %p91, %p92
      %s95 = sadd.s32 %s94, 1
      %p98 = scmp.eq.s32.totalorder %s18, 1
      %p99 = scmp.ne.s32.totalorder %s94, %s96
      %p100 = scmp.eq.s32.totalorder %s18, 0
      %p101 = por %p99, %p100
      %p102 = scmp.ne.s32.totalorder %s94, %s96
      %p103 = scmp.eq.s32.totalorder %s23, 1
      %p104 = por %p102, %p103
      %p105 = scmp.ne.s32.totalorder %s96, %s97
      %p106 = scmp.eq.s32.totalorder %s23, 0
      %p107 = por %p105, %p106
      %p108 = scmp.ne.s32.totalorder %s96, %s97
      %p109 = scmp.eq.s32.totalorder %s24, 1
      %p110 = por %p108, %p109
      %p112 = scmp.ne.s32.totalorder %s97, %s111
      %p113 = scmp.eq.s32.totalorder %s24, 0
      %p114 = por %p112, %p113
      %s116 = sadd.s32 %s115, 1
      %p119 = scmp.eq.s32.totalorder %s18, 1
      %p120 = scmp.ne.s32.totalorder %s115, %s117
      %p121 = scmp.eq.s32.totalorder %s18, 0
      %p122 = por %p120, %p121
      %p123 = scmp.ne.s32.totalorder %s115, %s117
      %p124 = scmp.eq.s32.totalorder %s23, 1
      %p125 = por %p123, %p124
      %p126 = scmp.ne.s32.totalorder %s117, %s118
      %p127 = scmp.eq.s32.totalorder %s23, 0
      %p128 = por %p126, %p127
      %p129 = scmp.ne.s32.totalorder %s117, %s118
      %p130 = scmp.eq.s32.totalorder %s24, 1
      %p131 = por %p129, %p130
      %p133 = scmp.ne.s32.totalorder %s118, %s132
      %p134 = scmp.eq.s32.totalorder %s24, 0
      %p135 = por %p133, %p134
      %s136 = ssub.s32 %s18, %s25
      %p137 = scmp.eq.s32.totalorder %s136, 0
      %s139 = sadd.s32 %s138, 1
      %s140 = scalar_select %p137, %s138, %s139
      %p143 = pneg %p137
      %p144 = scmp.eq.s32.totalorder %s18, 1
      %p145 = por %p143, %p144
      %p146 = scmp.ne.s32.totalorder %s138, %s141
      %p147 = scmp.eq.s32.totalorder %s18, 0
      %p148 = por %p146, %p147
      %p149 = scmp.ne.s32.totalorder %s138, %s141
      %p150 = scmp.eq.s32.totalorder %s23, 1
      %p151 = por %p149, %p150
      %p152 = scmp.ne.s32.totalorder %s141, %s142
      %p153 = scmp.eq.s32.totalorder %s23, 0
      %p154 = por %p152, %p153
      %p155 = scmp.ne.s32.totalorder %s141, %s142
      %p156 = scmp.eq.s32.totalorder %s24, 1
      %p157 = por %p155, %p156
      %p159 = scmp.ne.s32.totalorder %s142, %s158
      %p160 = scmp.eq.s32.totalorder %s24, 0
      %p161 = por %p159, %p160
      %p162 = scmp.le.s32.totalorder 1, %s18
      %p163 = scmp.lt.s32.totalorder %s18, 3
      %p164 = pnand %p162, %p163
      %p165 = pneg %p164
      // Predicated region
      $region9: #{tpu_custom_call.1} parent=5 // pred_check
        _
      $region10: #{tpu_custom_call.1} parent=5 // pred_check_branch
        %167 = sbr.rel (%p164) target = $region12
      $region11: #{tpu_custom_call.1} parent=5 // pred_region
        %s168 = ssub.s32 %s18, 1
        // Predicated region
        $region13: #{tpu_custom_call.1} parent=11 // pred_check
          %p169 = pneg %p65
        $region14: #{tpu_custom_call.1} parent=11 // pred_check_branch
          %171 = sbr.rel (%p169) target = $region16
        $region15: #{tpu_custom_call.1} parent=11 // pred_region
          %s173 = ssub.s32 1536, 1536
          %174 = vsyncadd [#allocation7], %s173
          %s175 = sshll.u32 [#allocation6], 4
          %s176 = int_to_ptr.vmem [resolvable:$true] %s175
          %181 = dma.hbm_to_vmem [thread:$0]  %s1, 1536, %s176, [#allocation7], 256, 256, 16
        $region16: #{tpu_custom_call.1} parent=11 // pred_fallthru
          _
        // Predicated region
        $region17: #{tpu_custom_call.1} parent=11 // pred_check
          %p182 = pneg %p86
        $region18: #{tpu_custom_call.1} parent=11 // pred_check_branch
          %184 = sbr.rel (%p182) target = $region20
        $region19: #{tpu_custom_call.1} parent=11 // pred_region
          _
        $region20: #{tpu_custom_call.1} parent=11 // pred_fallthru
          _
        // Predicated region
        $region21: #{tpu_custom_call.1} parent=11 // pred_check
          %p185 = pneg %p107
        $region22: #{tpu_custom_call.1} parent=11 // pred_check_branch
          %187 = sbr.rel (%p185) target = $region24
        $region23: #{tpu_custom_call.1} parent=11 // pred_region
          _
        $region24: #{tpu_custom_call.1} parent=11 // pred_fallthru
          _
        // Predicated region
        $region25: #{tpu_custom_call.1} parent=11 // pred_check
          %p188 = pneg %p128
        $region26: #{tpu_custom_call.1} parent=11 // pred_check_branch
          %190 = sbr.rel (%p188) target = $region28
        $region27: #{tpu_custom_call.1} parent=11 // pred_region
          _
        $region28: #{tpu_custom_call.1} parent=11 // pred_fallthru
          _
      $region12: #{tpu_custom_call.1} parent=5 // pred_fallthru
        _
      %p191 = scmp.lt.s32.totalorder %s18, 2
      // Predicated region
      $region29: #{tpu_custom_call.1} parent=5 // pred_check
        %p192 = pneg %p191
      $region30: #{tpu_custom_call.1} parent=5 // pred_check_branch
        %194 = sbr.rel (%p192) target = $region32
      $region31: #{tpu_custom_call.1} parent=5 // pred_region
        // Predicated region
        $region33: #{tpu_custom_call.1} parent=31 // pred_check
          %p195 = pneg %p38
        $region34: #{tpu_custom_call.1} parent=31 // pred_check_branch
          %197 = sbr.rel (%p195) target = $region36
        $region35: #{tpu_custom_call.1} parent=31 // pred_region
          %s198 = sand.u32 %s28, 1
          %s199 = scalar_lea.sflag [#allocation4], %s198
          %s200 = sand.u32 %s28, 1
          %s201 = smul.addr %s200, 72
          %s202 = scalar_lea.vmem [#allocation3], %s201
          %s204 = ssub.s32 1152, 1152
          %205 = vsyncadd %s199, %s204
          %s206 = smul.addr %s18, 9
          %s207 = smul.addr %s206, 128
          %s208 = scalar_lea.hbm %s0, %s207
          %s209 = sshll.u32 %s202, 4
          %s210 = int_to_ptr.vmem [resolvable:$true] %s209
          %215 = dma.hbm_to_vmem [thread:$0]  %s208, 1152, %s210, %s199, 384, 384, 24
        $region36: #{tpu_custom_call.1} parent=31 // pred_fallthru
          _
      $region32: #{tpu_custom_call.1} parent=5 // pred_fallthru
        _
      %p216 = scmp.le.s32.totalorder 1, %s18
      %p217 = scmp.lt.s32.totalorder %s18, 3
      %p218 = pnand %p216, %p217
      %p219 = pneg %p218
      // Predicated region
      $region37: #{tpu_custom_call.1} parent=5 // pred_check
        _
      $region38: #{tpu_custom_call.1} parent=5 // pred_check_branch
        %221 = sbr.rel (%p218) target = $region40
      $region39: #{tpu_custom_call.1} parent=5 // pred_region
        %s222 = ssub.s32 %s18, 1
        %s223 = sand.u32 %s31, 1
        %s224 = scalar_lea.sflag [#allocation4], %s223
        %s225 = sand.u32 %s31, 1
        %s226 = smul.addr %s225, 72
        %s227 = scalar_lea.vmem [#allocation3], %s226
        // Predicated region
        $region41: #{tpu_custom_call.1} parent=39 // pred_check
          %p228 = pneg %p44
        $region42: #{tpu_custom_call.1} parent=39 // pred_check_branch
          %230 = sbr.rel (%p228) target = $region44
        $region43: #{tpu_custom_call.1} parent=39 // pred_region
          %231 = dma.done %s224, 1152
        $region44: #{tpu_custom_call.1} parent=39 // pred_fallthru
          _
        // Predicated region
        $region45: #{tpu_custom_call.1} parent=39 // pred_check
          %p232 = pneg %p65
        $region46: #{tpu_custom_call.1} parent=39 // pred_check_branch
          %234 = sbr.rel (%p232) target = $region48
        $region47: #{tpu_custom_call.1} parent=39 // pred_region
          %235 = dma.done [#allocation7], 1536
        $region48: #{tpu_custom_call.1} parent=39 // pred_fallthru
          _
        %s236 = sand.u32 %s31, 1
        %s237 = scalar_lea.sflag [#allocation4], %s236
        %s238 = sand.u32 %s31, 1
        %s239 = smul.addr %s238, 72
        %s240 = scalar_lea.vmem [#allocation3], %s239
        %p241 = pneg %p44
        %p242 = pneg %p41
        %p243 = pneg %p65
        %p244 = pneg %p62
        %p245 = pneg %p86
        %p246 = pneg %p83
        %p247 = pneg %p107
        %p248 = pneg %p104
        %p249 = pneg %p128
        %p250 = pneg %p125
        %p251 = pneg %p154
        %p252 = pneg %p151
        %s253 = sand.u32 %s141, 1
        %s254 = scalar_lea.sflag [#allocation5], %s253
        %s255 = sand.u32 %s141, 1
        %s256 = smul.addr %s255, 48
        %s257 = scalar_lea.vmem [#allocation8], %s256
        %v258 = vld [vmem:[%s227] sm:$0xff]
        %v259 = vld [vmem:[%s227 + $0x8] sm:$0xff]
        %v260 = vld [vmem:[%s227 + $0x10] sm:$0xff]
        %v261 = vld [vmem:[%s227 + $0x18] sm:$0xff]
        %v262 = vld [vmem:[%s227 + $0x20] sm:$0xff]
        %v263 = vld [vmem:[%s227 + $0x28] sm:$0xff]
        %v264 = vld [vmem:[%s227 + $0x30] sm:$0xff]
        %v265 = vld [vmem:[%s227 + $0x38] sm:$0xff]
        %v266 = vld [vmem:[%s227 + $0x40] sm:$0xff]
        %276 = vrot.lane.b32.xlu0 %v258, 127
        %v277 = vpop.permute.xlu0 %276
        %278 = vrot.lane.b32.xlu0 %v259, 127
        %v279 = vpop.permute.xlu0 %278
        %280 = vrot.lane.b32.xlu0 %v260, 127
        %v281 = vpop.permute.xlu0 %280
        %282 = vrot.lane.b32.xlu0 %v261, 127
        %v283 = vpop.permute.xlu0 %282
        %284 = vrot.lane.b32.xlu0 %v262, 127
        %v285 = vpop.permute.xlu0 %284
        %286 = vrot.lane.b32.xlu0 %v263, 127
        %v287 = vpop.permute.xlu0 %286
        %288 = vrot.lane.b32.xlu0 %v264, 127
        %v289 = vpop.permute.xlu0 %288
        %290 = vrot.lane.b32.xlu0 %v265, 127
        %v291 = vpop.permute.xlu0 %290
        %292 = vrot.lane.b32.xlu0 %v266, 127
        %v293 = vpop.permute.xlu0 %292
        %vm294 = vcmask 1039360
        %v295 = vsel %vm294, %v277, %v279
        %v296 = vsel %vm294, %v279, %v281
        %v297 = vsel %vm294, %v283, %v285
        %v298 = vsel %vm294, %v285, %v287
        %v299 = vsel %vm294, %v289, %v291
        %v300 = vsel %vm294, %v291, %v293
        %310 = vrot.lane.b32.xlu0 %v258, 126
        %v311 = vpop.permute.xlu0 %310
        %312 = vrot.lane.b32.xlu0 %v259, 126
        %v313 = vpop.permute.xlu0 %312
        %314 = vrot.lane.b32.xlu0 %v260, 126
        %v315 = vpop.permute.xlu0 %314
        %316 = vrot.lane.b32.xlu0 %v261, 126
        %v317 = vpop.permute.xlu0 %316
        %318 = vrot.lane.b32.xlu0 %v262, 126
        %v319 = vpop.permute.xlu0 %318
        %320 = vrot.lane.b32.xlu0 %v263, 126
        %v321 = vpop.permute.xlu0 %320
        %322 = vrot.lane.b32.xlu0 %v264, 126
        %v323 = vpop.permute.xlu0 %322
        %324 = vrot.lane.b32.xlu0 %v265, 126
        %v325 = vpop.permute.xlu0 %324
        %326 = vrot.lane.b32.xlu0 %v266, 126
        %v327 = vpop.permute.xlu0 %326
        %vm328 = vcmask 1031168
        %v329 = vsel %vm328, %v311, %v313
        %v330 = vsel %vm328, %v313, %v315
        %v331 = vsel %vm328, %v317, %v319
        %v332 = vsel %vm328, %v319, %v321
        %v333 = vsel %vm328, %v323, %v325
        %v334 = vsel %vm328, %v325, %v327
        %344 = vrot.lane.b32.xlu0 %v258, 110
        %v345 = vpop.permute.xlu0 %344
        %346 = vrot.lane.b32.xlu0 %v259, 110
        %v347 = vpop.permute.xlu0 %346
        %348 = vrot.lane.b32.xlu0 %v260, 110
        %v349 = vpop.permute.xlu0 %348
        %350 = vrot.lane.b32.xlu0 %v261, 110
        %v351 = vpop.permute.xlu0 %350
        %352 = vrot.lane.b32.xlu0 %v262, 110
        %v353 = vpop.permute.xlu0 %352
        %354 = vrot.lane.b32.xlu0 %v263, 110
        %v355 = vpop.permute.xlu0 %354
        %356 = vrot.lane.b32.xlu0 %v264, 110
        %v357 = vpop.permute.xlu0 %356
        %358 = vrot.lane.b32.xlu0 %v265, 110
        %v359 = vpop.permute.xlu0 %358
        %360 = vrot.lane.b32.xlu0 %v266, 110
        %v361 = vpop.permute.xlu0 %360
        %vm362 = vcmask 900096
        %v363 = vsel %vm362, %v345, %v347
        %v364 = vsel %vm362, %v347, %v349
        %v365 = vsel %vm362, %v351, %v353
        %v366 = vsel %vm362, %v353, %v355
        %v367 = vsel %vm362, %v357, %v359
        %v368 = vsel %vm362, %v359, %v361
        %378 = vrot.lane.b32.xlu0 %v258, 109
        %v379 = vpop.permute.xlu0 %378
        %380 = vrot.lane.b32.xlu0 %v259, 109
        %v381 = vpop.permute.xlu0 %380
        %382 = vrot.lane.b32.xlu0 %v260, 109
        %v383 = vpop.permute.xlu0 %382
        %384 = vrot.lane.b32.xlu0 %v261, 109
        %v385 = vpop.permute.xlu0 %384
        %386 = vrot.lane.b32.xlu0 %v262, 109
        %v387 = vpop.permute.xlu0 %386
        %388 = vrot.lane.b32.xlu0 %v263, 109
        %v389 = vpop.permute.xlu0 %388
        %390 = vrot.lane.b32.xlu0 %v264, 109
        %v391 = vpop.permute.xlu0 %390
        %392 = vrot.lane.b32.xlu0 %v265, 109
        %v393 = vpop.permute.xlu0 %392
        %394 = vrot.lane.b32.xlu0 %v266, 109
        %v395 = vpop.permute.xlu0 %394
        %vm396 = vcmask 891904
        %v397 = vsel %vm396, %v379, %v381
        %v398 = vsel %vm396, %v381, %v383
        %v399 = vsel %vm396, %v385, %v387
        %v400 = vsel %vm396, %v387, %v389
        %v401 = vsel %vm396, %v391, %v393
        %v402 = vsel %vm396, %v393, %v395
        %412 = vrot.lane.b32.xlu0 %v258, 108
        %v413 = vpop.permute.xlu0 %412
        %414 = vrot.lane.b32.xlu0 %v259, 108
        %v415 = vpop.permute.xlu0 %414
        %416 = vrot.lane.b32.xlu0 %v260, 108
        %v417 = vpop.permute.xlu0 %416
        %418 = vrot.lane.b32.xlu0 %v261, 108
        %v419 = vpop.permute.xlu0 %418
        %420 = vrot.lane.b32.xlu0 %v262, 108
        %v421 = vpop.permute.xlu0 %420
        %422 = vrot.lane.b32.xlu0 %v263, 108
        %v423 = vpop.permute.xlu0 %422
        %424 = vrot.lane.b32.xlu0 %v264, 108
        %v425 = vpop.permute.xlu0 %424
        %426 = vrot.lane.b32.xlu0 %v265, 108
        %v427 = vpop.permute.xlu0 %426
        %428 = vrot.lane.b32.xlu0 %v266, 108
        %v429 = vpop.permute.xlu0 %428
        %vm430 = vcmask 883712
        %v431 = vsel %vm430, %v413, %v415
        %v432 = vsel %vm430, %v415, %v417
        %v433 = vsel %vm430, %v419, %v421
        %v434 = vsel %vm430, %v421, %v423
        %v435 = vsel %vm430, %v425, %v427
        %v436 = vsel %vm430, %v427, %v429
        %446 = vrot.lane.b32.xlu0 %v258, 92
        %v447 = vpop.permute.xlu0 %446
        %448 = vrot.lane.b32.xlu0 %v259, 92
        %v449 = vpop.permute.xlu0 %448
        %450 = vrot.lane.b32.xlu0 %v260, 92
        %v451 = vpop.permute.xlu0 %450
        %452 = vrot.lane.b32.xlu0 %v261, 92
        %v453 = vpop.permute.xlu0 %452
        %454 = vrot.lane.b32.xlu0 %v262, 92
        %v455 = vpop.permute.xlu0 %454
        %456 = vrot.lane.b32.xlu0 %v263, 92
        %v457 = vpop.permute.xlu0 %456
        %458 = vrot.lane.b32.xlu0 %v264, 92
        %v459 = vpop.permute.xlu0 %458
        %460 = vrot.lane.b32.xlu0 %v265, 92
        %v461 = vpop.permute.xlu0 %460
        %462 = vrot.lane.b32.xlu0 %v266, 92
        %v463 = vpop.permute.xlu0 %462
        %vm464 = vcmask 752640
        %v465 = vsel %vm464, %v447, %v449
        %v466 = vsel %vm464, %v449, %v451
        %v467 = vsel %vm464, %v453, %v455
        %v468 = vsel %vm464, %v455, %v457
        %v469 = vsel %vm464, %v459, %v461
        %v470 = vsel %vm464, %v461, %v463
        %480 = vrot.lane.b32.xlu0 %v258, 91
        %v481 = vpop.permute.xlu0 %480
        %482 = vrot.lane.b32.xlu0 %v259, 91
        %v483 = vpop.permute.xlu0 %482
        %484 = vrot.lane.b32.xlu0 %v260, 91
        %v485 = vpop.permute.xlu0 %484
        %486 = vrot.lane.b32.xlu0 %v261, 91
        %v487 = vpop.permute.xlu0 %486
        %488 = vrot.lane.b32.xlu0 %v262, 91
        %v489 = vpop.permute.xlu0 %488
        %490 = vrot.lane.b32.xlu0 %v263, 91
        %v491 = vpop.permute.xlu0 %490
        %492 = vrot.lane.b32.xlu0 %v264, 91
        %v493 = vpop.permute.xlu0 %492
        %494 = vrot.lane.b32.xlu0 %v265, 91
        %v495 = vpop.permute.xlu0 %494
        %496 = vrot.lane.b32.xlu0 %v266, 91
        %v497 = vpop.permute.xlu0 %496
        %vm498 = vcmask 744448
        %v499 = vsel %vm498, %v481, %v483
        %v500 = vsel %vm498, %v483, %v485
        %v501 = vsel %vm498, %v487, %v489
        %v502 = vsel %vm498, %v489, %v491
        %v503 = vsel %vm498, %v493, %v495
        %v504 = vsel %vm498, %v495, %v497
        %514 = vrot.lane.b32.xlu0 %v258, 90
        %v515 = vpop.permute.xlu0 %514
        %516 = vrot.lane.b32.xlu0 %v259, 90
        %v517 = vpop.permute.xlu0 %516
        %518 = vrot.lane.b32.xlu0 %v260, 90
        %v519 = vpop.permute.xlu0 %518
        %520 = vrot.lane.b32.xlu0 %v261, 90
        %v521 = vpop.permute.xlu0 %520
        %522 = vrot.lane.b32.xlu0 %v262, 90
        %v523 = vpop.permute.xlu0 %522
        %524 = vrot.lane.b32.xlu0 %v263, 90
        %v525 = vpop.permute.xlu0 %524
        %526 = vrot.lane.b32.xlu0 %v264, 90
        %v527 = vpop.permute.xlu0 %526
        %528 = vrot.lane.b32.xlu0 %v265, 90
        %v529 = vpop.permute.xlu0 %528
        %530 = vrot.lane.b32.xlu0 %v266, 90
        %v531 = vpop.permute.xlu0 %530
        %vm532 = vcmask 736256
        %v533 = vsel %vm532, %v515, %v517
        %v534 = vsel %vm532, %v517, %v519
        %v535 = vsel %vm532, %v521, %v523
        %v536 = vsel %vm532, %v523, %v525
        %v537 = vsel %vm532, %v527, %v529
        %v538 = vsel %vm532, %v529, %v531
        %v548 = vld [vmem:[#allocation6] sm:$0xff]
        %v549 = vld [vmem:[#allocation6 + $0x8] sm:$0xff]
        %v550 = vld [vmem:[#allocation6 + $0x10] sm:$0xff]
        %v551 = vld [vmem:[#allocation6 + $0x18] sm:$0xff]
        %v552 = vld [vmem:[#allocation6 + $0x20] sm:$0xff]
        %v553 = vld [vmem:[#allocation6 + $0x28] sm:$0xff]
        %v554 = vld [vmem:[#allocation6 + $0x30] sm:$0xff]
        %v555 = vld [vmem:[#allocation6 + $0x38] sm:$0xff]
        %v556 = vld [vmem:[#allocation6 + $0x40] sm:$0xff]
        %v557 = vld [vmem:[#allocation6 + $0x48] sm:$0xff]
        %v558 = vld [vmem:[#allocation6 + $0x50] sm:$0xff]
        %v559 = vld [vmem:[#allocation6 + $0x58] sm:$0xff]
        %v560 = vld [vmem:[%s3] sm:$0xff]
        %v561 = vld [vmem:[%s3 + $0x8] sm:$0xff]
        %v562 = vld [vmem:[%s3 + $0x10] sm:$0xff]
        %v563 = vld [vmem:[%s3 + $0x18] sm:$0xff]
        %v564 = vld [vmem:[%s3 + $0x20] sm:$0xff]
        %v565 = vld [vmem:[%s3 + $0x28] sm:$0xff]
        %567 = vset.pattern.permute.xlu0 0
        %568 = vperm.xlu0 %567, %v560
        %v569 = vpop.permute.xlu0 %568
        %572 = vset.pattern.permute.xlu0 0
        %573 = vperm.xlu0 %572, %v561
        %v574 = vpop.permute.xlu0 %573
        %577 = vset.pattern.permute.xlu0 0
        %578 = vperm.xlu0 %577, %v562
        %v579 = vpop.permute.xlu0 %578
        %582 = vset.pattern.permute.xlu0 0
        %583 = vperm.xlu0 %582, %v563
        %v584 = vpop.permute.xlu0 %583
        %587 = vset.pattern.permute.xlu0 0
        %588 = vperm.xlu0 %587, %v564
        %v589 = vpop.permute.xlu0 %588
        %592 = vset.pattern.permute.xlu0 0
        %593 = vperm.xlu0 %592, %v565
        %v594 = vpop.permute.xlu0 %593
        %vm596 = vcmask 719872
        %v598 = vsel %vm596, %v549, 0
        %v601 = vsel %vm596, %v551, 0
        %v604 = vsel %vm596, %v553, 0
        %v607 = vsel %vm596, %v555, 0
        %v610 = vsel %vm596, %v557, 0
        %v613 = vsel %vm596, %v559, 0
        %615 = vmatprep.subr.mxu0 %v432
        %616 = vmatpush1.msra.mxu0 %v431
        %617 = vmatprep.subr.mxu0 %v402
        %618 = vmatpush1.msra.mxu0 %v401
        %619 = vmatprep.subr.mxu0 %v400
        %620 = vmatpush1.msra.mxu0 %v399
        %621 = vmatprep.subr.mxu0 %v398
        %622 = vmatpush1.msra.mxu0 %v397
        %623 = vmatprep.subr.mxu0 %v368
        %624 = vmatpush1.msra.mxu0 %v367
        %625 = vmatprep.subr.mxu0 %v366
        %626 = vmatpush1.msra.mxu0 %v365
        %627 = vmatprep.subr.mxu0 %v364
        %628 = vmatpush1.msra.mxu0 %v363
        %629 = vmatprep.subr.mxu0 %v334
        %630 = vmatpush1.msra.mxu0 %v333
        %631 = vmatprep.subr.mxu0 %v332
        %632 = vmatpush1.msra.mxu0 %v331
        %633 = vmatprep.subr.mxu0 %v330
        %634 = vmatpush1.msra.mxu0 %v329
        %635 = vmatprep.subr.mxu0 %v300
        %636 = vmatpush1.msra.mxu0 %v299
        %637 = vmatprep.subr.mxu0 %v298
        %638 = vmatpush1.msra.mxu0 %v297
        %639 = vmatprep.subr.mxu0 %v296
        %640 = vmatpush1.msra.mxu0 %v295
        %641 = vmatprep.subr.mxu0 %v265
        %642 = vmatpush1.msra.mxu0 %v264
        %643 = vmatprep.subr.mxu0 %v262
        %644 = vmatpush1.msra.mxu0 %v261
        %645 = vmatprep.subr.mxu0 %v259
        %646 = vmatpush1.msra.mxu0 %v258
        %647 = vmatprep.subr.mxu0 0.0
        %648 = vmatpush2.msra.mxu0 0.0
        %649 = vmatprep.subr.mxu0 0.0
        %650 = vmatpush2.msra.mxu0 0.0
        %651 = vmatprep.subr.mxu0 0.0
        %652 = vmatpush2.msra.mxu0 0.0
        %653 = vmatprep.subr.mxu0 0.0
        %654 = vmatpush2.msra.mxu0 0.0
        %655 = vmatprep.subr.mxu0 0.0
        %656 = vmatpush2.msra.mxu0 0.0
        %657 = vmatprep.subr.mxu0 %v538
        %658 = vmatpush2.msra.mxu0 %v537
        %659 = vmatprep.subr.mxu0 %v536
        %660 = vmatpush2.msra.mxu0 %v535
        %661 = vmatprep.subr.mxu0 %v534
        %662 = vmatpush2.msra.mxu0 %v533
        %663 = vmatprep.subr.mxu0 %v504
        %664 = vmatpush2.msra.mxu0 %v503
        %665 = vmatprep.subr.mxu0 %v502
        %666 = vmatpush2.msra.mxu0 %v501
        %667 = vmatprep.subr.mxu0 %v500
        %668 = vmatpush2.msra.mxu0 %v499
        %669 = vmatprep.subr.mxu0 %v470
        %670 = vmatpush2.msra.mxu0 %v469
        %671 = vmatprep.subr.mxu0 %v468
        %672 = vmatpush2.msra.mxu0 %v467
        %673 = vmatprep.subr.mxu0 %v466
        %674 = vmatpush2.msra.mxu0 %v465
        %675 = vmatprep.subr.mxu0 %v436
        %676 = vmatpush2.msra.mxu0 %v435
        %677 = vmatprep.subr.mxu0 %v434
        %678 = vmatpush2.msra.mxu0 %v433
        %679 = vmatprep.mubr.f32.mxu0 %v598
        %680 = vmatmul.mubr.f32.gmra.mxu0 %v548
        %v681 = vpop.f32.mrf.mxu0
        %v682 = vadd.f32 %v569, %v681
        %v683 = vpop.f32.mrf.mxu0
        %v684 = vadd.f32 %v569, %v683
        %685 = vmatprep.mubr.f32.mxu0 %v601
        %686 = vmatmul.mubr.f32.gmra.mxu0 %v550
        %v687 = vpop.f32.mrf.mxu0
        %v688 = vadd.f32 %v574, %v687
        %v689 = vpop.f32.mrf.mxu0
        %v690 = vadd.f32 %v574, %v689
        %691 = vmatprep.mubr.f32.mxu0 %v604
        %692 = vmatmul.mubr.f32.gmra.mxu0 %v552
        %v693 = vpop.f32.mrf.mxu0
        %v694 = vadd.f32 %v579, %v693
        %v695 = vpop.f32.mrf.mxu0
        %v696 = vadd.f32 %v579, %v695
        %697 = vmatprep.mubr.f32.mxu0 %v607
        %698 = vmatmul.mubr.f32.gmra.mxu0 %v554
        %v699 = vpop.f32.mrf.mxu0
        %v700 = vadd.f32 %v584, %v699
        %v701 = vpop.f32.mrf.mxu0
        %v702 = vadd.f32 %v584, %v701
        %703 = vmatprep.mubr.f32.mxu0 %v610
        %704 = vmatmul.mubr.f32.gmra.mxu0 %v556
        %v705 = vpop.f32.mrf.mxu0
        %v706 = vadd.f32 %v589, %v705
        %v707 = vpop.f32.mrf.mxu0
        %v708 = vadd.f32 %v589, %v707
        %709 = vmatprep.mubr.f32.mxu0 %v613
        %710 = vmatmul.mubr.f32.gmra.mxu0 %v558
        %v711 = vpop.f32.mrf.mxu0
        %v712 = vadd.f32 %v594, %v711
        %v713 = vpop.f32.mrf.mxu0
        %v714 = vadd.f32 %v594, %v713
        %715 = vdwg.mxu0
        %716 = vmatprep.subr.mxu0 0.0
        %717 = vmatpush1.msra.mxu0 %v417
        %718 = vmatprep.subr.mxu0 0.0
        %719 = vmatpush1.msra.mxu0 %v395
        %720 = vmatprep.subr.mxu0 0.0
        %721 = vmatpush1.msra.mxu0 %v389
        %722 = vmatprep.subr.mxu0 0.0
        %723 = vmatpush1.msra.mxu0 %v383
        %724 = vmatprep.subr.mxu0 0.0
        %725 = vmatpush1.msra.mxu0 %v361
        %726 = vmatprep.subr.mxu0 0.0
        %727 = vmatpush1.msra.mxu0 %v355
        %728 = vmatprep.subr.mxu0 0.0
        %729 = vmatpush1.msra.mxu0 %v349
        %730 = vmatprep.subr.mxu0 0.0
        %731 = vmatpush1.msra.mxu0 %v327
        %732 = vmatprep.subr.mxu0 0.0
        %733 = vmatpush1.msra.mxu0 %v321
        %734 = vmatprep.subr.mxu0 0.0
        %735 = vmatpush1.msra.mxu0 %v315
        %736 = vmatprep.subr.mxu0 0.0
        %737 = vmatpush1.msra.mxu0 %v293
        %738 = vmatprep.subr.mxu0 0.0
        %739 = vmatpush1.msra.mxu0 %v287
        %740 = vmatprep.subr.mxu0 0.0
        %741 = vmatpush1.msra.mxu0 %v281
        %742 = vmatprep.subr.mxu0 0.0
        %743 = vmatpush1.msra.mxu0 %v266
        %744 = vmatprep.subr.mxu0 0.0
        %745 = vmatpush1.msra.mxu0 %v263
        %746 = vmatprep.subr.mxu0 0.0
        %747 = vmatpush1.msra.mxu0 %v260
        %748 = vmatprep.subr.mxu0 0.0
        %749 = vmatpush2.msra.mxu0 0.0
        %750 = vmatprep.subr.mxu0 0.0
        %751 = vmatpush2.msra.mxu0 0.0
        %752 = vmatprep.subr.mxu0 0.0
        %753 = vmatpush2.msra.mxu0 0.0
        %754 = vmatprep.subr.mxu0 0.0
        %755 = vmatpush2.msra.mxu0 0.0
        %756 = vmatprep.subr.mxu0 0.0
        %757 = vmatpush2.msra.mxu0 0.0
        %758 = vmatprep.subr.mxu0 0.0
        %759 = vmatpush2.msra.mxu0 %v531
        %760 = vmatprep.subr.mxu0 0.0
        %761 = vmatpush2.msra.mxu0 %v525
        %762 = vmatprep.subr.mxu0 0.0
        %763 = vmatpush2.msra.mxu0 %v519
        %764 = vmatprep.subr.mxu0 0.0
        %765 = vmatpush2.msra.mxu0 %v497
        %766 = vmatprep.subr.mxu0 0.0
        %767 = vmatpush2.msra.mxu0 %v491
        %768 = vmatprep.subr.mxu0 0.0
        %769 = vmatpush2.msra.mxu0 %v485
        %770 = vmatprep.subr.mxu0 0.0
        %771 = vmatpush2.msra.mxu0 %v463
        %772 = vmatprep.subr.mxu0 0.0
        %773 = vmatpush2.msra.mxu0 %v457
        %774 = vmatprep.subr.mxu0 0.0
        %775 = vmatpush2.msra.mxu0 %v451
        %776 = vmatprep.subr.mxu0 0.0
        %777 = vmatpush2.msra.mxu0 %v429
        %778 = vmatprep.subr.mxu0 0.0
        %779 = vmatpush2.msra.mxu0 %v423
        %780 = vmatprep.mubr.f32.mxu0 %v598
        %781 = vmatmul.mubr.f32.gmra.mxu0 %v548
        %v782 = vpop.f32.mrf.mxu0
        %v783 = vadd.f32 %v569, %v782
        %v784 = vpop.f32.mrf.mxu0
        %785 = vmatprep.mubr.f32.mxu0 %v601
        %786 = vmatmul.mubr.f32.gmra.mxu0 %v550
        %v787 = vpop.f32.mrf.mxu0
        %v788 = vadd.f32 %v574, %v787
        %v789 = vpop.f32.mrf.mxu0
        %790 = vmatprep.mubr.f32.mxu0 %v604
        %791 = vmatmul.mubr.f32.gmra.mxu0 %v552
        %v792 = vpop.f32.mrf.mxu0
        %v793 = vadd.f32 %v579, %v792
        %v794 = vpop.f32.mrf.mxu0
        %795 = vmatprep.mubr.f32.mxu0 %v607
        %796 = vmatmul.mubr.f32.gmra.mxu0 %v554
        %v797 = vpop.f32.mrf.mxu0
        %v798 = vadd.f32 %v584, %v797
        %v799 = vpop.f32.mrf.mxu0
        %800 = vmatprep.mubr.f32.mxu0 %v610
        %801 = vmatmul.mubr.f32.gmra.mxu0 %v556
        %v802 = vpop.f32.mrf.mxu0
        %v803 = vadd.f32 %v589, %v802
        %v804 = vpop.f32.mrf.mxu0
        %805 = vmatprep.mubr.f32.mxu0 %v613
        %806 = vmatmul.mubr.f32.gmra.mxu0 %v558
        %v807 = vpop.f32.mrf.mxu0
        %v808 = vadd.f32 %v594, %v807
        %v809 = vpop.f32.mrf.mxu0
        %810 = vdwg.mxu0
        %v811 = vxor.u32 %v682, 2147483648
        %v812 = vxor.u32 %v684, 2147483648
        %v813 = vxor.u32 %v783, 2147483648
        %v814 = vxor.u32 %v688, 2147483648
        %v815 = vxor.u32 %v690, 2147483648
        %v816 = vxor.u32 %v788, 2147483648
        %v817 = vmul.f32 %v811, 1.442695
        %v818 = vpow.pop %v817
        %v819 = vmul.f32 %v812, 1.442695
        %v820 = vpow.pop %v819
        %v821 = vmul.f32 %v813, 1.442695
        %v822 = vpow.pop %v821
        %v823 = vmul.f32 %v814, 1.442695
        %v824 = vpow.pop %v823
        %v825 = vmul.f32 %v815, 1.442695
        %v826 = vpow.pop %v825
        %v827 = vmul.f32 %v816, 1.442695
        %v828 = vpow.pop %v827
        %v829 = vadd.f32 %v818, 1.0
        %v830 = vadd.f32 %v820, 1.0
        %v831 = vadd.f32 %v822, 1.0
        %v832 = vadd.f32 %v824, 1.0
        %v833 = vadd.f32 %v826, 1.0
        %v834 = vadd.f32 %v828, 1.0
        %v835 = vrcp.pop %v829
        %v836 = vmul.f32 1.0, %v835
        %v837 = vrcp.pop %v830
        %v838 = vmul.f32 1.0, %v837
        %v839 = vrcp.pop %v831
        %v840 = vmul.f32 1.0, %v839
        %v841 = vrcp.pop %v832
        %v842 = vmul.f32 1.0, %v841
        %v843 = vrcp.pop %v833
        %v844 = vmul.f32 1.0, %v843
        %v845 = vrcp.pop %v834
        %v846 = vmul.f32 1.0, %v845
        %v847 = vxor.u32 %v694, 2147483648
        %v848 = vxor.u32 %v696, 2147483648
        %v849 = vxor.u32 %v793, 2147483648
        %v850 = vxor.u32 %v700, 2147483648
        %v851 = vxor.u32 %v702, 2147483648
        %v852 = vxor.u32 %v798, 2147483648
        %v853 = vmul.f32 %v847, 1.442695
        %v854 = vpow.pop %v853
        %v855 = vmul.f32 %v848, 1.442695
        %v856 = vpow.pop %v855
        %v857 = vmul.f32 %v849, 1.442695
        %v858 = vpow.pop %v857
        %v859 = vmul.f32 %v850, 1.442695
        %v860 = vpow.pop %v859
        %v861 = vmul.f32 %v851, 1.442695
        %v862 = vpow.pop %v861
        %v863 = vmul.f32 %v852, 1.442695
        %v864 = vpow.pop %v863
        %v865 = vadd.f32 %v854, 1.0
        %v866 = vadd.f32 %v856, 1.0
        %v867 = vadd.f32 %v858, 1.0
        %v868 = vadd.f32 %v860, 1.0
        %v869 = vadd.f32 %v862, 1.0
        %v870 = vadd.f32 %v864, 1.0
        %v871 = vrcp.pop %v865
        %v872 = vmul.f32 1.0, %v871
        %v873 = vrcp.pop %v866
        %v874 = vmul.f32 1.0, %v873
        %v875 = vrcp.pop %v867
        %v876 = vmul.f32 1.0, %v875
        %v877 = vrcp.pop %v868
        %v878 = vmul.f32 1.0, %v877
        %v879 = vrcp.pop %v869
        %v880 = vmul.f32 1.0, %v879
        %v881 = vrcp.pop %v870
        %v882 = vmul.f32 1.0, %v881
        %v883 = vmul.f32 %v872, %v397
        %v884 = vmul.f32 %v874, %v398
        %v885 = vmul.f32 %v876, %v383
        %v886 = vmul.f32 %v878, %v399
        %v887 = vmul.f32 %v880, %v400
        %v888 = vmul.f32 %v882, %v389
        %v889 = vld [vmem:[%s4] sm:$0x7]
        %v891 = vlaneseq
        %v892 = vshrl.u32 %v891, 7
        %v893 = vsub.s32 0, %v892
        %v894 = vrot.slane %v889, %v893
        %v895 = vlaneseq
        %v896 = vshrl.u32 %v895, 7
        %v897 = vsub.s32 1, %v896
        %v898 = vrot.slane %v889, %v897
        %v899 = vlaneseq
        %v900 = vshrl.u32 %v899, 7
        %v901 = vsub.s32 2, %v900
        %v902 = vrot.slane %v889, %v901
        %v906 = vmul.f32 %v883, %v894
        %v907 = vmul.f32 %v884, %v898
        %v908 = vmul.f32 %v885, %v902
        %v909 = vmul.f32 %v886, %v894
        %v910 = vmul.f32 %v887, %v898
        %v911 = vmul.f32 %v888, %v902
        %912 = vst [vmem:[#allocation2] sm:$0xff] 0.0
        %913 = vst [vmem:[#allocation2 + $0x8] sm:$0xff] 0.0
        %vm914 = vcmask 572416
        %915 = vst.msk [vmem:[#allocation2 + $0x10] sm:$0xff] %vm914, 0.0
        %916 = vst [vmem:[#allocation2 + $0x18] sm:$0xff] 0.0
        %917 = vst [vmem:[#allocation2 + $0x20] sm:$0xff] 0.0
        %918 = vst.msk [vmem:[#allocation2 + $0x28] sm:$0xff] %vm914, 0.0
        %925 = vrot.lane.b32.xlu0 %v906, 19
        %v926 = vpop.permute.xlu0 %925
        %927 = vrot.lane.b32.xlu0 %v907, 19
        %v928 = vpop.permute.xlu0 %927
        %929 = vrot.lane.b32.xlu0 %v908, 19
        %v930 = vpop.permute.xlu0 %929
        %931 = vrot.lane.b32.xlu0 %v909, 19
        %v932 = vpop.permute.xlu0 %931
        %933 = vrot.lane.b32.xlu0 %v910, 19
        %v934 = vpop.permute.xlu0 %933
        %935 = vrot.lane.b32.xlu0 %v911, 19
        %v936 = vpop.permute.xlu0 %935
        %vm937 = vcmask 154624
        %v938 = vsel %vm937, %v926, %v928
        %v939 = vsel %vm937, %v928, %v930
        %v940 = vsel %vm937, %v932, %v934
        %v941 = vsel %vm937, %v934, %v936
        %vm948 = vcmask 1047704
        %949 = vst.msk [vmem:[#allocation2] sm:$0xff] %vm948, %v926
        %950 = vst [vmem:[#allocation2 + $0x8] sm:$0xff] %v938
        %vm951 = vcmask 416768
        %952 = vst.msk [vmem:[#allocation2 + $0x10] sm:$0xff] %vm951, %v939
        %953 = vst.msk [vmem:[#allocation2 + $0x18] sm:$0xff] %vm948, %v932
        %954 = vst [vmem:[#allocation2 + $0x20] sm:$0xff] %v940
        %955 = vst.msk [vmem:[#allocation2 + $0x28] sm:$0xff] %vm951, %v941
        %v956 = vld [vmem:[#allocation2] sm:$0xff]
        %v957 = vld [vmem:[#allocation2 + $0x8] sm:$0xff]
        %v958 = vld [vmem:[#allocation2 + $0x10] sm:$0xff]
        %v959 = vld [vmem:[#allocation2 + $0x18] sm:$0xff]
        %v960 = vld [vmem:[#allocation2 + $0x20] sm:$0xff]
        %v961 = vld [vmem:[#allocation2 + $0x28] sm:$0xff]
        %968 = vrot.lane.b32.xlu0 %v956, 127
        %v969 = vpop.permute.xlu0 %968
        %970 = vrot.lane.b32.xlu0 %v957, 127
        %v971 = vpop.permute.xlu0 %970
        %972 = vrot.lane.b32.xlu0 %v958, 127
        %v973 = vpop.permute.xlu0 %972
        %974 = vrot.lane.b32.xlu0 %v959, 127
        %v975 = vpop.permute.xlu0 %974
        %976 = vrot.lane.b32.xlu0 %v960, 127
        %v977 = vpop.permute.xlu0 %976
        %978 = vrot.lane.b32.xlu0 %v961, 127
        %v979 = vpop.permute.xlu0 %978
        %v980 = vsel %vm294, %v969, %v971
        %v981 = vsel %vm294, %v971, %v973
        %v982 = vsel %vm294, %v975, %v977
        %v983 = vsel %vm294, %v977, %v979
        %990 = vrot.lane.b32.xlu0 %v956, 126
        %v991 = vpop.permute.xlu0 %990
        %992 = vrot.lane.b32.xlu0 %v957, 126
        %v993 = vpop.permute.xlu0 %992
        %994 = vrot.lane.b32.xlu0 %v958, 126
        %v995 = vpop.permute.xlu0 %994
        %996 = vrot.lane.b32.xlu0 %v959, 126
        %v997 = vpop.permute.xlu0 %996
        %998 = vrot.lane.b32.xlu0 %v960, 126
        %v999 = vpop.permute.xlu0 %998
        %1000 = vrot.lane.b32.xlu0 %v961, 126
        %v1001 = vpop.permute.xlu0 %1000
        %v1002 = vsel %vm328, %v991, %v993
        %v1003 = vsel %vm328, %v993, %v995
        %v1004 = vsel %vm328, %v997, %v999
        %v1005 = vsel %vm328, %v999, %v1001
        %1012 = vrot.lane.b32.xlu0 %v956, 110
        %v1013 = vpop.permute.xlu0 %1012
        %1014 = vrot.lane.b32.xlu0 %v957, 110
        %v1015 = vpop.permute.xlu0 %1014
        %1016 = vrot.lane.b32.xlu0 %v958, 110
        %v1017 = vpop.permute.xlu0 %1016
        %1018 = vrot.lane.b32.xlu0 %v959, 110
        %v1019 = vpop.permute.xlu0 %1018
        %1020 = vrot.lane.b32.xlu0 %v960, 110
        %v1021 = vpop.permute.xlu0 %1020
        %1022 = vrot.lane.b32.xlu0 %v961, 110
        %v1023 = vpop.permute.xlu0 %1022
        %v1024 = vsel %vm362, %v1013, %v1015
        %v1025 = vsel %vm362, %v1015, %v1017
        %v1026 = vsel %vm362, %v1019, %v1021
        %v1027 = vsel %vm362, %v1021, %v1023
        %1034 = vrot.lane.b32.xlu0 %v956, 109
        %v1035 = vpop.permute.xlu0 %1034
        %1036 = vrot.lane.b32.xlu0 %v957, 109
        %v1037 = vpop.permute.xlu0 %1036
        %1038 = vrot.lane.b32.xlu0 %v958, 109
        %v1039 = vpop.permute.xlu0 %1038
        %1040 = vrot.lane.b32.xlu0 %v959, 109
        %v1041 = vpop.permute.xlu0 %1040
        %1042 = vrot.lane.b32.xlu0 %v960, 109
        %v1043 = vpop.permute.xlu0 %1042
        %1044 = vrot.lane.b32.xlu0 %v961, 109
        %v1045 = vpop.permute.xlu0 %1044
        %v1046 = vsel %vm396, %v1035, %v1037
        %v1047 = vsel %vm396, %v1037, %v1039
        %v1048 = vsel %vm396, %v1041, %v1043
        %v1049 = vsel %vm396, %v1043, %v1045
        %1056 = vrot.lane.b32.xlu0 %v956, 108
        %v1057 = vpop.permute.xlu0 %1056
        %1058 = vrot.lane.b32.xlu0 %v957, 108
        %v1059 = vpop.permute.xlu0 %1058
        %1060 = vrot.lane.b32.xlu0 %v958, 108
        %v1061 = vpop.permute.xlu0 %1060
        %1062 = vrot.lane.b32.xlu0 %v959, 108
        %v1063 = vpop.permute.xlu0 %1062
        %1064 = vrot.lane.b32.xlu0 %v960, 108
        %v1065 = vpop.permute.xlu0 %1064
        %1066 = vrot.lane.b32.xlu0 %v961, 108
        %v1067 = vpop.permute.xlu0 %1066
        %v1068 = vsel %vm430, %v1057, %v1059
        %v1069 = vsel %vm430, %v1059, %v1061
        %v1070 = vsel %vm430, %v1063, %v1065
        %v1071 = vsel %vm430, %v1065, %v1067
        %1078 = vrot.lane.b32.xlu0 %v956, 92
        %v1079 = vpop.permute.xlu0 %1078
        %1080 = vrot.lane.b32.xlu0 %v957, 92
        %v1081 = vpop.permute.xlu0 %1080
        %1082 = vrot.lane.b32.xlu0 %v958, 92
        %v1083 = vpop.permute.xlu0 %1082
        %1084 = vrot.lane.b32.xlu0 %v959, 92
        %v1085 = vpop.permute.xlu0 %1084
        %1086 = vrot.lane.b32.xlu0 %v960, 92
        %v1087 = vpop.permute.xlu0 %1086
        %1088 = vrot.lane.b32.xlu0 %v961, 92
        %v1089 = vpop.permute.xlu0 %1088
        %v1090 = vsel %vm464, %v1079, %v1081
        %v1091 = vsel %vm464, %v1081, %v1083
        %v1092 = vsel %vm464, %v1085, %v1087
        %v1093 = vsel %vm464, %v1087, %v1089
        %1100 = vrot.lane.b32.xlu0 %v956, 91
        %v1101 = vpop.permute.xlu0 %1100
        %1102 = vrot.lane.b32.xlu0 %v957, 91
        %v1103 = vpop.permute.xlu0 %1102
        %1104 = vrot.lane.b32.xlu0 %v958, 91
        %v1105 = vpop.permute.xlu0 %1104
        %1106 = vrot.lane.b32.xlu0 %v959, 91
        %v1107 = vpop.permute.xlu0 %1106
        %1108 = vrot.lane.b32.xlu0 %v960, 91
        %v1109 = vpop.permute.xlu0 %1108
        %1110 = vrot.lane.b32.xlu0 %v961, 91
        %v1111 = vpop.permute.xlu0 %1110
        %v1112 = vsel %vm498, %v1101, %v1103
        %v1113 = vsel %vm498, %v1103, %v1105
        %v1114 = vsel %vm498, %v1107, %v1109
        %v1115 = vsel %vm498, %v1109, %v1111
        %1122 = vrot.lane.b32.xlu0 %v956, 90
        %v1123 = vpop.permute.xlu0 %1122
        %1124 = vrot.lane.b32.xlu0 %v957, 90
        %v1125 = vpop.permute.xlu0 %1124
        %1126 = vrot.lane.b32.xlu0 %v958, 90
        %v1127 = vpop.permute.xlu0 %1126
        %1128 = vrot.lane.b32.xlu0 %v959, 90
        %v1129 = vpop.permute.xlu0 %1128
        %1130 = vrot.lane.b32.xlu0 %v960, 90
        %v1131 = vpop.permute.xlu0 %1130
        %1132 = vrot.lane.b32.xlu0 %v961, 90
        %v1133 = vpop.permute.xlu0 %1132
        %v1134 = vsel %vm532, %v1123, %v1125
        %v1135 = vsel %vm532, %v1125, %v1127
        %v1136 = vsel %vm532, %v1129, %v1131
        %v1137 = vsel %vm532, %v1131, %v1133
        %v1144 = vld [vmem:[%s2] sm:$0xff]
        %v1145 = vld [vmem:[%s2 + $0x8] sm:$0xff]
        %v1146 = vld [vmem:[%s2 + $0x10] sm:$0xff]
        %v1147 = vld [vmem:[%s2 + $0x18] sm:$0xff]
        %vm1148 = vcmask 130048
        %v1150 = vsel %vm1148, %v1145, 0
        %v1153 = vsel %vm1148, %v1147, 0
        %1155 = vmatprep.subr.mxu0 %v1115
        %1156 = vmatpush1.msra.mxu0 %v1114
        %1157 = vmatprep.subr.mxu0 %v1113
        %1158 = vmatpush1.msra.mxu0 %v1112
        %1159 = vmatprep.subr.mxu0 %v1093
        %1160 = vmatpush1.msra.mxu0 %v1092
        %1161 = vmatprep.subr.mxu0 %v1091
        %1162 = vmatpush1.msra.mxu0 %v1090
        %1163 = vmatprep.subr.mxu0 %v1071
        %1164 = vmatpush1.msra.mxu0 %v1070
        %1165 = vmatprep.subr.mxu0 %v1069
        %1166 = vmatpush1.msra.mxu0 %v1068
        %1167 = vmatprep.subr.mxu0 %v1049
        %1168 = vmatpush1.msra.mxu0 %v1048
        %1169 = vmatprep.subr.mxu0 %v1047
        %1170 = vmatpush1.msra.mxu0 %v1046
        %1171 = vmatprep.subr.mxu0 %v1027
        %1172 = vmatpush1.msra.mxu0 %v1026
        %1173 = vmatprep.subr.mxu0 %v1025
        %1174 = vmatpush1.msra.mxu0 %v1024
        %1175 = vmatprep.subr.mxu0 %v1005
        %1176 = vmatpush1.msra.mxu0 %v1004
        %1177 = vmatprep.subr.mxu0 %v1003
        %1178 = vmatpush1.msra.mxu0 %v1002
        %1179 = vmatprep.subr.mxu0 %v983
        %1180 = vmatpush1.msra.mxu0 %v982
        %1181 = vmatprep.subr.mxu0 %v981
        %1182 = vmatpush1.msra.mxu0 %v980
        %1183 = vmatprep.subr.mxu0 %v960
        %1184 = vmatpush1.msra.mxu0 %v959
        %1185 = vmatprep.subr.mxu0 %v957
        %1186 = vmatpush1.msra.mxu0 %v956
        %1187 = vmatprep.subr.mxu0 0.0
        %1188 = vmatpush2.msra.mxu0 0.0
        %1189 = vmatprep.subr.mxu0 0.0
        %1190 = vmatpush2.msra.mxu0 0.0
        %1191 = vmatprep.subr.mxu0 0.0
        %1192 = vmatpush2.msra.mxu0 0.0
        %1193 = vmatprep.subr.mxu0 0.0
        %1194 = vmatpush2.msra.mxu0 0.0
        %1195 = vmatprep.subr.mxu0 0.0
        %1196 = vmatpush2.msra.mxu0 0.0
        %1197 = vmatprep.subr.mxu0 0.0
        %1198 = vmatpush2.msra.mxu0 0.0
        %1199 = vmatprep.subr.mxu0 0.0
        %1200 = vmatpush2.msra.mxu0 0.0
        %1201 = vmatprep.subr.mxu0 0.0
        %1202 = vmatpush2.msra.mxu0 0.0
        %1203 = vmatprep.subr.mxu0 0.0
        %1204 = vmatpush2.msra.mxu0 0.0
        %1205 = vmatprep.subr.mxu0 0.0
        %1206 = vmatpush2.msra.mxu0 0.0
        %1207 = vmatprep.subr.mxu0 0.0
        %1208 = vmatpush2.msra.mxu0 0.0
        %1209 = vmatprep.subr.mxu0 0.0
        %1210 = vmatpush2.msra.mxu0 0.0
        %1211 = vmatprep.subr.mxu0 0.0
        %1212 = vmatpush2.msra.mxu0 0.0
        %1213 = vmatprep.subr.mxu0 0.0
        %1214 = vmatpush2.msra.mxu0 0.0
        %1215 = vmatprep.subr.mxu0 %v1137
        %1216 = vmatpush2.msra.mxu0 %v1136
        %1217 = vmatprep.subr.mxu0 %v1135
        %1218 = vmatpush2.msra.mxu0 %v1134
        %1219 = vmatprep.mubr.f32.mxu0 %v1150
        %1220 = vmatmul.mubr.f32.gmra.mxu0 %v1144
        %v1221 = vpop.f32.mrf.mxu0
        %v1222 = vadd.f32 0.0, %v1221
        %v1223 = vpop.f32.mrf.mxu0
        %v1224 = vadd.f32 0.0, %v1223
        %1225 = vmatprep.mubr.f32.mxu0 %v1153
        %1226 = vmatmul.mubr.f32.gmra.mxu0 %v1146
        %v1227 = vpop.f32.mrf.mxu0
        %v1228 = vadd.f32 0.0, %v1227
        %v1229 = vpop.f32.mrf.mxu0
        %v1230 = vadd.f32 0.0, %v1229
        %1231 = vdwg.mxu0
        %1232 = vmatprep.subr.mxu0 0.0
        %1233 = vmatpush1.msra.mxu0 %v1111
        %1234 = vmatprep.subr.mxu0 0.0
        %1235 = vmatpush1.msra.mxu0 %v1105
        %1236 = vmatprep.subr.mxu0 0.0
        %1237 = vmatpush1.msra.mxu0 %v1089
        %1238 = vmatprep.subr.mxu0 0.0
        %1239 = vmatpush1.msra.mxu0 %v1083
        %1240 = vmatprep.subr.mxu0 0.0
        %1241 = vmatpush1.msra.mxu0 %v1067
        %1242 = vmatprep.subr.mxu0 0.0
        %1243 = vmatpush1.msra.mxu0 %v1061
        %1244 = vmatprep.subr.mxu0 0.0
        %1245 = vmatpush1.msra.mxu0 %v1045
        %1246 = vmatprep.subr.mxu0 0.0
        %1247 = vmatpush1.msra.mxu0 %v1039
        %1248 = vmatprep.subr.mxu0 0.0
        %1249 = vmatpush1.msra.mxu0 %v1023
        %1250 = vmatprep.subr.mxu0 0.0
        %1251 = vmatpush1.msra.mxu0 %v1017
        %1252 = vmatprep.subr.mxu0 0.0
        %1253 = vmatpush1.msra.mxu0 %v1001
        %1254 = vmatprep.subr.mxu0 0.0
        %1255 = vmatpush1.msra.mxu0 %v995
        %1256 = vmatprep.subr.mxu0 0.0
        %1257 = vmatpush1.msra.mxu0 %v979
        %1258 = vmatprep.subr.mxu0 0.0
        %1259 = vmatpush1.msra.mxu0 %v973
        %1260 = vmatprep.subr.mxu0 0.0
        %1261 = vmatpush1.msra.mxu0 %v961
        %1262 = vmatprep.subr.mxu0 0.0
        %1263 = vmatpush1.msra.mxu0 %v958
        %1264 = vmatprep.subr.mxu0 0.0
        %1265 = vmatpush2.msra.mxu0 0.0
        %1266 = vmatprep.subr.mxu0 0.0
        %1267 = vmatpush2.msra.mxu0 0.0
        %1268 = vmatprep.subr.mxu0 0.0
        %1269 = vmatpush2.msra.mxu0 0.0
        %1270 = vmatprep.subr.mxu0 0.0
        %1271 = vmatpush2.msra.mxu0 0.0
        %1272 = vmatprep.subr.mxu0 0.0
        %1273 = vmatpush2.msra.mxu0 0.0
        %1274 = vmatprep.subr.mxu0 0.0
        %1275 = vmatpush2.msra.mxu0 0.0
        %1276 = vmatprep.subr.mxu0 0.0
        %1277 = vmatpush2.msra.mxu0 0.0
        %1278 = vmatprep.subr.mxu0 0.0
        %1279 = vmatpush2.msra.mxu0 0.0
        %1280 = vmatprep.subr.mxu0 0.0
        %1281 = vmatpush2.msra.mxu0 0.0
        %1282 = vmatprep.subr.mxu0 0.0
        %1283 = vmatpush2.msra.mxu0 0.0
        %1284 = vmatprep.subr.mxu0 0.0
        %1285 = vmatpush2.msra.mxu0 0.0
        %1286 = vmatprep.subr.mxu0 0.0
        %1287 = vmatpush2.msra.mxu0 0.0
        %1288 = vmatprep.subr.mxu0 0.0
        %1289 = vmatpush2.msra.mxu0 0.0
        %1290 = vmatprep.subr.mxu0 0.0
        %1291 = vmatpush2.msra.mxu0 0.0
        %1292 = vmatprep.subr.mxu0 0.0
        %1293 = vmatpush2.msra.mxu0 %v1133
        %1294 = vmatprep.subr.mxu0 0.0
        %1295 = vmatpush2.msra.mxu0 %v1127
        %1296 = vmatprep.mubr.f32.mxu0 %v1150
        %1297 = vmatmul.mubr.f32.gmra.mxu0 %v1144
        %v1298 = vpop.f32.mrf.mxu0
        %v1299 = vadd.f32 0.0, %v1298
        %v1300 = vpop.f32.mrf.mxu0
        %1301 = vmatprep.mubr.f32.mxu0 %v1153
        %1302 = vmatmul.mubr.f32.gmra.mxu0 %v1146
        %v1303 = vpop.f32.mrf.mxu0
        %v1304 = vadd.f32 0.0, %v1303
        %v1305 = vpop.f32.mrf.mxu0
        %1306 = vdwg.mxu0
        %v1307 = vadd.f32 %v706, %v1222
        %v1308 = vadd.f32 %v708, %v1224
        %v1309 = vadd.f32 %v803, %v1299
        %v1310 = vadd.f32 %v712, %v1228
        %v1311 = vadd.f32 %v714, %v1230
        %v1312 = vadd.f32 %v808, %v1304
        %v1313 = vtanh.pop %v1307
        %v1314 = vtanh.pop %v1308
        %v1315 = vtanh.pop %v1309
        %v1316 = vtanh.pop %v1310
        %v1317 = vtanh.pop %v1311
        %v1318 = vtanh.pop %v1312
        %v1319 = vsub.f32 1.0, %v836
        %v1320 = vsub.f32 1.0, %v838
        %v1321 = vsub.f32 1.0, %v840
        %v1322 = vsub.f32 1.0, %v842
        %v1323 = vsub.f32 1.0, %v844
        %v1324 = vsub.f32 1.0, %v846
        %v1325 = vmul.f32 %v1319, %v397
        %v1326 = vmul.f32 %v1320, %v398
        %v1327 = vmul.f32 %v1321, %v383
        %v1328 = vmul.f32 %v1322, %v399
        %v1329 = vmul.f32 %v1323, %v400
        %v1330 = vmul.f32 %v1324, %v389
        %v1331 = vmul.f32 %v836, %v1313
        %v1332 = vmul.f32 %v838, %v1314
        %v1333 = vmul.f32 %v840, %v1315
        %v1334 = vmul.f32 %v842, %v1316
        %v1335 = vmul.f32 %v844, %v1317
        %v1336 = vmul.f32 %v846, %v1318
        %v1337 = vadd.f32 %v1325, %v1331
        %v1338 = vadd.f32 %v1326, %v1332
        %v1339 = vadd.f32 %v1327, %v1333
        %v1340 = vadd.f32 %v1328, %v1334
        %v1341 = vadd.f32 %v1329, %v1335
        %v1342 = vadd.f32 %v1330, %v1336
        %1343 = vst [vmem:[%s257] sm:$0xff] %v1337
        %1344 = vst [vmem:[%s257 + $0x8] sm:$0xff] %v1338
        %vm1345 = vcmask 261120
        %1346 = vst.msk [vmem:[%s257 + $0x10] sm:$0xff] %vm1345, %v1339
        %1347 = vst [vmem:[%s257 + $0x18] sm:$0xff] %v1340
        %1348 = vst [vmem:[%s257 + $0x20] sm:$0xff] %v1341
        %1349 = vst.msk [vmem:[%s257 + $0x28] sm:$0xff] %vm1345, %v1342
        %s1350 = sand.u32 %s141, 1
        %s1351 = scalar_lea.sflag [#allocation5], %s1350
        %s1352 = sand.u32 %s141, 1
        %s1353 = smul.addr %s1352, 48
        %s1354 = scalar_lea.vmem [#allocation8], %s1353
        // Predicated region
        $region49: #{tpu_custom_call.1} parent=39 // pred_check
          %p1355 = pneg %p151
        $region50: #{tpu_custom_call.1} parent=39 // pred_check_branch
          %1357 = sbr.rel (%p1355) target = $region52
        $region51: #{tpu_custom_call.1} parent=39 // pred_region
          %s1359 = ssub.s32 768, 768
          %1360 = vsyncadd %s1351, %s1359
          %s1361 = smul.addr %s23, 6
          %s1362 = smul.addr %s1361, 128
          %s1363 = scalar_lea.hbm %s5, %s1362
          %s1364 = sshll.u32 %s1354, 4
          %s1365 = int_to_ptr.vmem [resolvable:$true] %s1364
          %1370 = dma.vmem_to_hbm [thread:$0]  %s1365, 768, %s1363, %s1351, 384, 384, 24
        $region52: #{tpu_custom_call.1} parent=39 // pred_fallthru
          _
      $region40: #{tpu_custom_call.1} parent=5 // pred_fallthru
        _
      %p1371 = scmp.le.s32.totalorder 2, %s18
      // Predicated region
      $region53: #{tpu_custom_call.1} parent=5 // pred_check
        %p1372 = pneg %p1371
      $region54: #{tpu_custom_call.1} parent=5 // pred_check_branch
        %1374 = sbr.rel (%p1372) target = $region56
      $region55: #{tpu_custom_call.1} parent=5 // pred_region
        %s1375 = ssub.s32 %s18, 2
        // Predicated region
        $region57: #{tpu_custom_call.1} parent=55 // pred_check
          %p1376 = pneg %p157
        $region58: #{tpu_custom_call.1} parent=55 // pred_check_branch
          %1378 = sbr.rel (%p1376) target = $region60
        $region59: #{tpu_custom_call.1} parent=55 // pred_region
          %s1379 = sand.u32 %s142, 1
          %s1380 = scalar_lea.sflag [#allocation5], %s1379
          %s1381 = sand.u32 %s142, 1
          %s1382 = smul.addr %s1381, 48
          %s1383 = scalar_lea.vmem [#allocation8], %s1382
          %1384 = dma.done %s1380, 768
        $region60: #{tpu_custom_call.1} parent=55 // pred_fallthru
          _
      $region56: #{tpu_custom_call.1} parent=5 // pred_fallthru
        _
    $region6: #{tpu_custom_call.1} parent=1 // loop_footer
      %s22 = sadd.s32 1, %s18
    $region7: #{tpu_custom_call.1} parent=1 // loop_footer_branch
      %17 = sbr.rel target = $region3
    $region8: #{tpu_custom_call.1} parent=1 // loop_exit
      _
    %1385 = vsyncpa [#allocation4], 1
    %s1386 = scalar_lea.sflag [#allocation4], 1
    %1387 = vsyncpa %s1386, 1
    %1388 = vsyncpa [#allocation7], 1
    %1389 = vsyncpa [#allocation5], 1
    %s1390 = scalar_lea.sflag [#allocation5], 1
    %1391 = vsyncpa %s1390, 1

</llo_original>
